<compile_context>
chip_gen: v6e
topology: v6e:2x2x1
jax: 0.10.0
libtpu: 0.0.40
codegen_flags: <defaults>
</compile_context>

<pallas_src>
import jax
import jax.numpy as jnp
from jax.experimental import pallas as pl
from jax.experimental.pallas import tpu as pltpu


def _round_up(x, m):
    return (x + m - 1) // m * m


def _pad8(c):
    # f32 sublane padding: a (.., C, P) block occupies ceil(C/8)*8 sublanes.
    return _round_up(c, 8)


def _divisors(m):
    ds = set()
    i = 1
    while i * i <= m:
        if m % i == 0:
            ds.add(i)
            ds.add(m // i)
        i += 1
    return sorted(ds)


# ---- generation-dependent knobs (queried once; conservative on failure) ----
try:
    _VMEM_CAP = int(getattr(pltpu.get_tpu_info(), "vmem_capacity_bytes",
                            64 * 1024 * 1024))
except Exception:
    _VMEM_CAP = 64 * 1024 * 1024            # assume v7x-like (smallest VMEM)

if _VMEM_CAP >= 100 * 1024 * 1024:          # v5e / v6e: 128 MiB physical VMEM
    _VMEM_CLAMP = 96 * 1024 * 1024
    _BLOCK_TARGET = 8 * 1024 * 1024         # in+out bytes per grid step
else:                                       # v7x: 64 MiB physical VMEM
    _VMEM_CLAMP = 48 * 1024 * 1024
    _BLOCK_TARGET = 4 * 1024 * 1024

_MIN_BLOCK = 256 * 1024                     # below this, per-step overhead dominates


# --------------------------------- kernels ----------------------------------
def _sigmoid(x):
    # exp on the EUP, reciprocal on the EUP -> VALU slot stays free.
    return pl.reciprocal(1.0 + jnp.exp(-x))


def _deta_conv_vpu_kernel(x_ref, w_ref, o_ref):
    """Tiny-channel path: unrolled VPU broadcast-FMA over channels (exact f32).

    x_ref: (nb, C_in, TP), w_ref: (C_out, C_in), o_ref: (nb, C_out, TP).
    """
    w = w_ref[...].astype(jnp.float32)       # (C_out, C_in), tiny
    nb, c_in, _ = x_ref.shape
    for b in range(nb):                      # nb is small and static
        x = x_ref[b].astype(jnp.float32)     # (C_in, TP)
        acc = w[:, 0:1] * x[0:1, :]
        for c in range(1, c_in):
            acc = acc + w[:, c:c + 1] * x[c:c + 1, :]
        o_ref[b] = _sigmoid(acc).astype(o_ref.dtype)


def _deta_conv_mxu_kernel(x_ref, w_ref, o_ref):
    """Larger-channel path: MXU matmul.  precision=HIGHEST keeps f32 parity
    with the PyTorch f32 conv (default precision may drop to bf16 passes)."""
    w = w_ref[...]
    nb = x_ref.shape[0]
    for b in range(nb):
        acc = jnp.dot(w, x_ref[b],
                      preferred_element_type=jnp.float32,
                      precision=jax.lax.Precision.HIGHEST)
        o_ref[b] = _sigmoid(acc).astype(o_ref.dtype)


# ------------------------------ tile selection -------------------------------
def _choose_tiling(n, c_in, c_out, hw128):
    """Pick (nb, tile_p): tile_p divides hw128 (a multiple of 128), nb divides n."""
    m = hw128 // 128
    # bytes of in+out per 128-lane pixel group, with f32 sublane padding
    lane_group_bytes = 128 * (_pad8(c_in) + _pad8(c_out)) * 4
    want_groups = max(1, _BLOCK_TARGET // lane_group_bytes)

    divs = _divisors(m)
    d = max(dv for dv in divs if dv <= want_groups)          # 1 always qualifies

    # Keep >=2 pixel blocks / >=4 total blocks (v7x megacore + pipelining depth)
    # as long as the per-step block stays above _MIN_BLOCK.
    min_pb = max(2, 4 // max(n, 1))
    for dv in sorted((dv for dv in divs if dv < d), reverse=True):
        if m // d >= min_pb:
            break
        if dv * lane_group_bytes < _MIN_BLOCK:
            break
        d = dv
    tile_p = 128 * d
    pixel_blocks = m // d

    # Tiny feature maps: fold several batch images into one grid step so the
    # step still moves ~_BLOCK_TARGET bytes.
    per_image_block = d * lane_group_bytes
    nb_want = max(1, _BLOCK_TARGET // per_image_block)
    if n * pixel_blocks >= 4:
        nb_want = min(nb_want, max(1, (n * pixel_blocks) // 4))
    nb = max(dv for dv in _divisors(n) if dv <= nb_want)
    return nb, tile_p


# --------------------------------- wrapper -----------------------------------
@jax.jit
def deta_conv_forward(x_nchw, weight):
    """x_nchw: (N, C_in, H, W).  weight: (C_out, C_in) -- PyTorch Conv2d weight
    (C_out, C_in, 1, 1) squeezed.  Returns sigmoid(1x1 conv): (N, C_out, H, W)."""
    n, c_in, h, w = x_nchw.shape
    c_out = weight.shape[0]
    hw = h * w

    # Pixels-on-lanes layout: NCHW row-major is already (N, C_in, H*W).
    x_flat = x_nchw.reshape(n, c_in, hw)

    # Pad only to a multiple of 128 (never to the tile size); only triggers for
    # spatial sizes that are not already lane-aligned.
    hw128 = _round_up(hw, 128)
    if hw128 != hw:
        # TODO(synk): replace with in-kernel tail masking to avoid the XLA pad copy.
        x_flat = jnp.pad(x_flat, ((0, 0), (0, 0), (0, hw128 - hw)))

    nb, tile_p = _choose_tiling(n, c_in, c_out, hw128)
    grid = (n // nb, hw128 // tile_p)

    # Scoped VMEM: double-buffered in/out blocks + elementwise temporaries +
    # weight, with f32 sublane padding accounted for; clamped per generation.
    blk = nb * (_pad8(c_in) + _pad8(c_out)) * tile_p * 4
    w_bytes = _pad8(c_out) * _round_up(c_in, 128) * 4
    vmem_limit = int(min(max(6 * blk + 4 * w_bytes, 32 * 1024 * 1024), _VMEM_CLAMP))

    kernel = _deta_conv_vpu_kernel if c_in * c_out <= 64 else _deta_conv_mxu_kernel

    out_flat = pl.pallas_call(
        kernel,
        out_shape=jax.ShapeDtypeStruct((n, c_out, hw128), x_nchw.dtype),
        grid_spec=pltpu.PrefetchScalarGridSpec(
            num_scalar_prefetch=0,
            grid=grid,
            in_specs=[
                # (nb, C_in, tile_p) pixel tile; channel dim is the full array dim.
                pl.BlockSpec((nb, c_in, tile_p), lambda b, p: (b, 0, p)),
                # Full weight, resident in VMEM every step.
                pl.BlockSpec((c_out, c_in), lambda b, p: (0, 0)),
            ],
            out_specs=pl.BlockSpec((nb, c_out, tile_p), lambda b, p: (b, 0, p)),
        ),
        compiler_params=pltpu.CompilerParams(
            dimension_semantics=("parallel", "parallel"),
            vmem_limit_bytes=vmem_limit,
        ),
    )(x_flat, weight)

    if hw128 != hw:
        out_flat = out_flat[:, :, :hw]
    return out_flat.reshape(n, c_out, h, w)


def reference_forward(x_nchw, weight):
    """Pure-JAX reference: 1x1 conv (no bias) + sigmoid, NCHW."""
    y = jnp.einsum("nchw,oc->nohw", x_nchw, weight)
    return jax.nn.sigmoid(y)


if __name__ == "__main__":
    key = jax.random.PRNGKey(0)
    kx, kw, kx2, kw2 = jax.random.split(key, 4)

    # deta_conv(input_c=4, output_c=8) on a (2, 4, 16, 16) input (VPU path).
    batch, input_c, output_c, spatial = 2, 4, 8, 16
    x = jax.random.normal(kx, (batch, input_c, spatial, spatial), dtype=jnp.float32)

    # Torch Conv2d default init: kaiming-uniform bound = 1/sqrt(fan_in) for 1x1.
    bound = 1.0 / (input_c ** 0.5)
    weight = jax.random.uniform(
        kw, (output_c, input_c), dtype=jnp.float32, minval=-bound, maxval=bound
    )

    out = jax.block_until_ready(deta_conv_forward(x, weight))
    ref = reference_forward(x, weight)
    assert out.shape == (batch, output_c, spatial, spatial)
    assert jnp.allclose(out, ref, atol=1e-5, rtol=1e-5), "mismatch vs reference (VPU path)"

    # Also exercise the MXU path (larger channel counts).
    x2 = jax.random.normal(kx2, (batch, 32, spatial, spatial), dtype=jnp.float32)
    w2 = jax.random.uniform(kw2, (64, 32), dtype=jnp.float32, minval=-0.2, maxval=0.2)
    out2 = jax.block_until_ready(deta_conv_forward(x2, w2))
    ref2 = reference_forward(x2, w2)
    assert jnp.allclose(out2, ref2, atol=1e-5, rtol=1e-5), "mismatch vs reference (MXU path)"

    print("KERNEL_OK")
</pallas_src>

<mosaic_0001>
module attributes {stable_mosaic.version = 11 : i64} {
  func.func @_deta_conv_vpu_kernel(%arg0: i32, %arg1: i32, %arg2: memref<2x4x256xf32, #tpu.memory_space<vmem>>, %arg3: memref<8x4xf32, #tpu.memory_space<vmem>>, %arg4: memref<2x8x256xf32, #tpu.memory_space<vmem>>) attributes {dimension_semantics = [#tpu.dimension_semantics<parallel>, #tpu.dimension_semantics<parallel>], iteration_bounds = array<i64: 1, 1>, scalar_prefetch = 0 : i64, scratch_operands = 0 : i64, tpu.core_type = #tpu.core_type<tc>, window_params = [{transform_indices = @transform_0, window_bounds = array<i64: 2, 4, 256>}, {pipeline_mode = #tpu.pipeline_mode<synchronous>, transform_indices = @transform_1, window_bounds = array<i64: 8, 4>}, {transform_indices = @transform_2, window_bounds = array<i64: 2, 8, 256>}]} {
    %c0 = arith.constant 0 : index
    %c0_0 = arith.constant 0 : index
    %0 = vector.load %arg3[%c0, %c0_0] : memref<8x4xf32, #tpu.memory_space<vmem>>, vector<8x4xf32>
    %c0_1 = arith.constant 0 : index
    %c0_2 = arith.constant 0 : index
    %c0_3 = arith.constant 0 : index
    %1 = vector.load %arg2[%c0_1, %c0_2, %c0_3] : memref<2x4x256xf32, #tpu.memory_space<vmem>>, vector<1x4x256xf32>
    %2 = vector.shape_cast %1 : vector<1x4x256xf32> to vector<4x256xf32>
    %3 = vector.extract_strided_slice %0 {offsets = [0, 0], sizes = [8, 1], strides = [1, 1]} : vector<8x4xf32> to vector<8x1xf32>
    %4 = vector.extract_strided_slice %2 {offsets = [0, 0], sizes = [1, 256], strides = [1, 1]} : vector<4x256xf32> to vector<1x256xf32>
    %5 = vector.broadcast %3 : vector<8x1xf32> to vector<8x256xf32>
    %6 = vector.broadcast %4 : vector<1x256xf32> to vector<8x256xf32>
    %7 = arith.mulf %5, %6 : vector<8x256xf32>
    %8 = vector.extract_strided_slice %0 {offsets = [0, 1], sizes = [8, 1], strides = [1, 1]} : vector<8x4xf32> to vector<8x1xf32>
    %9 = vector.extract_strided_slice %2 {offsets = [1, 0], sizes = [1, 256], strides = [1, 1]} : vector<4x256xf32> to vector<1x256xf32>
    %10 = vector.broadcast %8 : vector<8x1xf32> to vector<8x256xf32>
    %11 = vector.broadcast %9 : vector<1x256xf32> to vector<8x256xf32>
    %12 = arith.mulf %10, %11 : vector<8x256xf32>
    %13 = arith.addf %7, %12 : vector<8x256xf32>
    %14 = vector.extract_strided_slice %0 {offsets = [0, 2], sizes = [8, 1], strides = [1, 1]} : vector<8x4xf32> to vector<8x1xf32>
    %15 = vector.extract_strided_slice %2 {offsets = [2, 0], sizes = [1, 256], strides = [1, 1]} : vector<4x256xf32> to vector<1x256xf32>
    %16 = vector.broadcast %14 : vector<8x1xf32> to vector<8x256xf32>
    %17 = vector.broadcast %15 : vector<1x256xf32> to vector<8x256xf32>
    %18 = arith.mulf %16, %17 : vector<8x256xf32>
    %19 = arith.addf %13, %18 : vector<8x256xf32>
    %20 = vector.extract_strided_slice %0 {offsets = [0, 3], sizes = [8, 1], strides = [1, 1]} : vector<8x4xf32> to vector<8x1xf32>
    %21 = vector.extract_strided_slice %2 {offsets = [3, 0], sizes = [1, 256], strides = [1, 1]} : vector<4x256xf32> to vector<1x256xf32>
    %22 = vector.broadcast %20 : vector<8x1xf32> to vector<8x256xf32>
    %23 = vector.broadcast %21 : vector<1x256xf32> to vector<8x256xf32>
    %24 = arith.mulf %22, %23 : vector<8x256xf32>
    %25 = arith.addf %19, %24 : vector<8x256xf32>
    %cst = arith.constant 0.000000e+00 : f32
    %26 = vector.broadcast %cst : f32 to vector<8x256xf32>
    %27 = arith.subf %26, %25 : vector<8x256xf32>
    %28 = math.exp %27 : vector<8x256xf32>
    %cst_4 = arith.constant 1.000000e+00 : f32
    %29 = vector.broadcast %cst_4 : f32 to vector<8x256xf32>
    %30 = arith.addf %29, %28 : vector<8x256xf32>
    %31 = tpu.reciprocal %30 : vector<8x256xf32> -> vector<8x256xf32>
    %c0_5 = arith.constant 0 : index
    %c0_6 = arith.constant 0 : index
    %c0_7 = arith.constant 0 : index
    %32 = vector.load %arg4[%c0_5, %c0_6, %c0_7] : memref<2x8x256xf32, #tpu.memory_space<vmem>>, vector<1x8x256xf32>
    %33 = vector.shape_cast %32 : vector<1x8x256xf32> to vector<8x256xf32>
    %34 = vector.shape_cast %31 : vector<8x256xf32> to vector<1x8x256xf32>
    tpu.vector_store %arg4[%c0_5, %c0_6, %c0_7], %34 {strides = array<i32>} : memref<2x8x256xf32, #tpu.memory_space<vmem>>, vector<1x8x256xf32>,
    %c1 = arith.constant 1 : index
    %c0_8 = arith.constant 0 : index
    %c0_9 = arith.constant 0 : index
    %35 = vector.load %arg2[%c1, %c0_8, %c0_9] : memref<2x4x256xf32, #tpu.memory_space<vmem>>, vector<1x4x256xf32>
    %36 = vector.shape_cast %35 : vector<1x4x256xf32> to vector<4x256xf32>
    %37 = vector.extract_strided_slice %0 {offsets = [0, 0], sizes = [8, 1], strides = [1, 1]} : vector<8x4xf32> to vector<8x1xf32>
    %38 = vector.extract_strided_slice %36 {offsets = [0, 0], sizes = [1, 256], strides = [1, 1]} : vector<4x256xf32> to vector<1x256xf32>
    %39 = vector.broadcast %37 : vector<8x1xf32> to vector<8x256xf32>
    %40 = vector.broadcast %38 : vector<1x256xf32> to vector<8x256xf32>
    %41 = arith.mulf %39, %40 : vector<8x256xf32>
    %42 = vector.extract_strided_slice %0 {offsets = [0, 1], sizes = [8, 1], strides = [1, 1]} : vector<8x4xf32> to vector<8x1xf32>
    %43 = vector.extract_strided_slice %36 {offsets = [1, 0], sizes = [1, 256], strides = [1, 1]} : vector<4x256xf32> to vector<1x256xf32>
    %44 = vector.broadcast %42 : vector<8x1xf32> to vector<8x256xf32>
    %45 = vector.broadcast %43 : vector<1x256xf32> to vector<8x256xf32>
    %46 = arith.mulf %44, %45 : vector<8x256xf32>
    %47 = arith.addf %41, %46 : vector<8x256xf32>
    %48 = vector.extract_strided_slice %0 {offsets = [0, 2], sizes = [8, 1], strides = [1, 1]} : vector<8x4xf32> to vector<8x1xf32>
    %49 = vector.extract_strided_slice %36 {offsets = [2, 0], sizes = [1, 256], strides = [1, 1]} : vector<4x256xf32> to vector<1x256xf32>
    %50 = vector.broadcast %48 : vector<8x1xf32> to vector<8x256xf32>
    %51 = vector.broadcast %49 : vector<1x256xf32> to vector<8x256xf32>
    %52 = arith.mulf %50, %51 : vector<8x256xf32>
    %53 = arith.addf %47, %52 : vector<8x256xf32>
    %54 = vector.extract_strided_slice %0 {offsets = [0, 3], sizes = [8, 1], strides = [1, 1]} : vector<8x4xf32> to vector<8x1xf32>
    %55 = vector.extract_strided_slice %36 {offsets = [3, 0], sizes = [1, 256], strides = [1, 1]} : vector<4x256xf32> to vector<1x256xf32>
    %56 = vector.broadcast %54 : vector<8x1xf32> to vector<8x256xf32>
    %57 = vector.broadcast %55 : vector<1x256xf32> to vector<8x256xf32>
    %58 = arith.mulf %56, %57 : vector<8x256xf32>
    %59 = arith.addf %53, %58 : vector<8x256xf32>
    %cst_10 = arith.constant 0.000000e+00 : f32
    %60 = vector.broadcast %cst_10 : f32 to vector<8x256xf32>
    %61 = arith.subf %60, %59 : vector<8x256xf32>
    %62 = math.exp %61 : vector<8x256xf32>
    %cst_11 = arith.constant 1.000000e+00 : f32
    %63 = vector.broadcast %cst_11 : f32 to vector<8x256xf32>
    %64 = arith.addf %63, %62 : vector<8x256xf32>
    %65 = tpu.reciprocal %64 : vector<8x256xf32> -> vector<8x256xf32>
    %c1_12 = arith.constant 1 : index
    %c0_13 = arith.constant 0 : index
    %c0_14 = arith.constant 0 : index
    %66 = vector.load %arg4[%c1_12, %c0_13, %c0_14] : memref<2x8x256xf32, #tpu.memory_space<vmem>>, vector<1x8x256xf32>
    %67 = vector.shape_cast %66 : vector<1x8x256xf32> to vector<8x256xf32>
    %68 = vector.shape_cast %65 : vector<8x256xf32> to vector<1x8x256xf32>
    tpu.vector_store %arg4[%c1_12, %c0_13, %c0_14], %68 {strides = array<i32>} : memref<2x8x256xf32, #tpu.memory_space<vmem>>, vector<1x8x256xf32>,
    return
  }
  func.func @transform_0(%arg0: i32, %arg1: i32) -> (i32, i32, i32) {
    %c0_i32 = arith.constant 0 : i32
    %c0_i32_0 = arith.constant 0 : i32
    return %arg0, %c0_i32, %arg1 : i32, i32, i32
  }
  func.func @transform_1(%arg0: i32, %arg1: i32) -> (i32, i32) {
    %c0_i32 = arith.constant 0 : i32
    %c0_i32_0 = arith.constant 0 : i32
    %c0_i32_1 = arith.constant 0 : i32
    return %c0_i32, %c0_i32_0 : i32, i32
  }
  func.func @transform_2(%arg0: i32, %arg1: i32) -> (i32, i32, i32) {
    %c0_i32 = arith.constant 0 : i32
    %c0_i32_0 = arith.constant 0 : i32
    return %arg0, %c0_i32, %arg1 : i32, i32, i32
  }
}

</mosaic_0001>

<llo_original>
// kernel: deta_conv_forward.1
$region0: #{deta_conv_forward.1}
  #allocation0 [shape = 'u32[]', space=smem, size = 0x4, offset = 0x4, fixed_abs, tag = 'smem constant byte address 0x4 - core index']
  #allocation1 [shape = 'u32[144,128]{1,0:T(1,128)}', space=vmem, size = 0x12000, scoped, tag = 'internal scratch']
  %s0 = inlined_call_operand.vmem [shape: f32[2,4,256], index: 0, kind: input, shape index: {}]
  %s1 = inlined_call_operand.vmem [shape: f32[8,4], index: 1, kind: input, shape index: {}]
  %s2 = inlined_call_operand.vmem [shape: f32[2,8,256], index: 2, kind: output, shape index: {}]
  %s3 = sld [smem:[#allocation0]]
  $region18: #{deta_conv_forward.1} parent=0
    _
  %s5 = ssub.s32 1, %s3
  %s6 = scalar_select 0, %s5, %s3
  // Predicated region
  $region2: #{deta_conv_forward.1} parent=0 // pred_check
    _
  $region3: #{deta_conv_forward.1} parent=0 // pred_check_branch
    %8 = sbr.rel (0) target = $region5
  $region4: #{deta_conv_forward.1} parent=0 // pred_region
    _
  $region5: #{deta_conv_forward.1} parent=0 // pred_fallthru
    _
  // Predicated region
  $region6: #{deta_conv_forward.1} parent=0 // pred_check
    _
  $region7: #{deta_conv_forward.1} parent=0 // pred_check_branch
    %10 = sbr.rel (0) target = $region9
  $region8: #{deta_conv_forward.1} parent=0 // pred_region
    _
  $region9: #{deta_conv_forward.1} parent=0 // pred_fallthru
    _
  %v11 = vld [vmem:[%s1] sm:$0xff]
  %v12 = vld [vmem:[%s0] sm:$0xff]
  %14 = vset.pattern.permute.xlu0 0
  %15 = vperm.xlu0 %14, %v11
  %v16 = vpop.permute.xlu0 %15
  %v19 = vlaneseq
  %v20 = vshrl.u32 %v19, 7
  %v21 = vsub.s32 0, %v20
  %v22 = vrot.slane %v12, %v21
  %v23 = vlaneseq
  %v24 = vshrl.u32 %v23, 7
  %v25 = vsub.s32 4, %v24
  %v26 = vrot.slane %v12, %v25
  %v29 = vlaneseq
  %v30 = vshrl.u32 %v29, 7
  %v31 = vsub.s32 0, %v30
  %v32 = vrot.slane %v22, %v31
  %v33 = vlaneseq
  %v34 = vshrl.u32 %v33, 7
  %v35 = vsub.s32 0, %v34
  %v36 = vrot.slane %v26, %v35
  %v37 = vmul.f32 %v16, %v32
  %v38 = vmul.f32 %v16, %v36
  %39 = vset.pattern.permute.xlu0 1
  %40 = vperm.xlu0 %39, %v11
  %v41 = vpop.permute.xlu0 %40
  %v43 = vlaneseq
  %v44 = vshrl.u32 %v43, 7
  %v45 = vsub.s32 1, %v44
  %v46 = vrot.slane %v12, %v45
  %v47 = vlaneseq
  %v48 = vshrl.u32 %v47, 7
  %v49 = vsub.s32 5, %v48
  %v50 = vrot.slane %v12, %v49
  %v53 = vlaneseq
  %v54 = vshrl.u32 %v53, 7
  %v55 = vsub.s32 1, %v54
  %v56 = vrot.slane %v46, %v55
  %v57 = vlaneseq
  %v58 = vshrl.u32 %v57, 7
  %v59 = vsub.s32 1, %v58
  %v60 = vrot.slane %v50, %v59
  %v61 = vmul.f32 %v41, %v56
  %v62 = vmul.f32 %v41, %v60
  %v63 = vadd.f32 %v37, %v61
  %v64 = vadd.f32 %v38, %v62
  %65 = vset.pattern.permute.xlu0 2
  %66 = vperm.xlu0 %65, %v11
  %v67 = vpop.permute.xlu0 %66
  %v69 = vlaneseq
  %v70 = vshrl.u32 %v69, 7
  %v71 = vsub.s32 2, %v70
  %v72 = vrot.slane %v12, %v71
  %v73 = vlaneseq
  %v74 = vshrl.u32 %v73, 7
  %v75 = vsub.s32 6, %v74
  %v76 = vrot.slane %v12, %v75
  %v79 = vlaneseq
  %v80 = vshrl.u32 %v79, 7
  %v81 = vsub.s32 2, %v80
  %v82 = vrot.slane %v72, %v81
  %v83 = vlaneseq
  %v84 = vshrl.u32 %v83, 7
  %v85 = vsub.s32 2, %v84
  %v86 = vrot.slane %v76, %v85
  %v87 = vmul.f32 %v67, %v82
  %v88 = vmul.f32 %v67, %v86
  %v89 = vadd.f32 %v63, %v87
  %v90 = vadd.f32 %v64, %v88
  %91 = vset.pattern.permute.xlu0 3
  %92 = vperm.xlu0 %91, %v11
  %v93 = vpop.permute.xlu0 %92
  %v95 = vlaneseq
  %v96 = vshrl.u32 %v95, 7
  %v97 = vsub.s32 3, %v96
  %v98 = vrot.slane %v12, %v97
  %v99 = vlaneseq
  %v100 = vshrl.u32 %v99, 7
  %v101 = vsub.s32 7, %v100
  %v102 = vrot.slane %v12, %v101
  %v105 = vlaneseq
  %v106 = vshrl.u32 %v105, 7
  %v107 = vsub.s32 3, %v106
  %v108 = vrot.slane %v98, %v107
  %v109 = vlaneseq
  %v110 = vshrl.u32 %v109, 7
  %v111 = vsub.s32 3, %v110
  %v112 = vrot.slane %v102, %v111
  %v113 = vmul.f32 %v93, %v108
  %v114 = vmul.f32 %v93, %v112
  %v115 = vadd.f32 %v89, %v113
  %v116 = vadd.f32 %v90, %v114
  %v117 = vsub.f32 0.0, %v115
  %v118 = vsub.f32 0.0, %v116
  %v119 = vmul.f32 %v117, 1.442695
  %v120 = vpow.pop %v119
  %v121 = vmul.f32 %v118, 1.442695
  %v122 = vpow.pop %v121
  %v123 = vadd.f32 %v120, 1.0
  %v124 = vadd.f32 %v122, 1.0
  %v125 = vrcp.pop %v123
  %v126 = vrcp.pop %v124
  %127 = vst [vmem:[%s2] sm:$0xff] %v125
  %128 = vst [vmem:[%s2 + $0x8] sm:$0xff] %v126
  %s129 = scalar_lea.vmem %s0, 8
  %v130 = vld [vmem:[%s129] sm:$0xff]
  %v132 = vlaneseq
  %v133 = vshrl.u32 %v132, 7
  %v134 = vsub.s32 0, %v133
  %v135 = vrot.slane %v130, %v134
  %v136 = vlaneseq
  %v137 = vshrl.u32 %v136, 7
  %v138 = vsub.s32 4, %v137
  %v139 = vrot.slane %v130, %v138
  %v142 = vlaneseq
  %v143 = vshrl.u32 %v142, 7
  %v144 = vsub.s32 0, %v143
  %v145 = vrot.slane %v135, %v144
  %v146 = vlaneseq
  %v147 = vshrl.u32 %v146, 7
  %v148 = vsub.s32 0, %v147
  %v149 = vrot.slane %v139, %v148
  %v150 = vmul.f32 %v16, %v145
  %v151 = vmul.f32 %v16, %v149
  %v152 = vlaneseq
  %v153 = vshrl.u32 %v152, 7
  %v154 = vsub.s32 1, %v153
  %v155 = vrot.slane %v130, %v154
  %v156 = vlaneseq
  %v157 = vshrl.u32 %v156, 7
  %v158 = vsub.s32 5, %v157
  %v159 = vrot.slane %v130, %v158
  %v162 = vlaneseq
  %v163 = vshrl.u32 %v162, 7
  %v164 = vsub.s32 1, %v163
  %v165 = vrot.slane %v155, %v164
  %v166 = vlaneseq
  %v167 = vshrl.u32 %v166, 7
  %v168 = vsub.s32 1, %v167
  %v169 = vrot.slane %v159, %v168
  %v170 = vmul.f32 %v41, %v165
  %v171 = vmul.f32 %v41, %v169
  %v172 = vadd.f32 %v150, %v170
  %v173 = vadd.f32 %v151, %v171
  %v174 = vlaneseq
  %v175 = vshrl.u32 %v174, 7
  %v176 = vsub.s32 2, %v175
  %v177 = vrot.slane %v130, %v176
  %v178 = vlaneseq
  %v179 = vshrl.u32 %v178, 7
  %v180 = vsub.s32 6, %v179
  %v181 = vrot.slane %v130, %v180
  %v184 = vlaneseq
  %v185 = vshrl.u32 %v184, 7
  %v186 = vsub.s32 2, %v185
  %v187 = vrot.slane %v177, %v186
  %v188 = vlaneseq
  %v189 = vshrl.u32 %v188, 7
  %v190 = vsub.s32 2, %v189
  %v191 = vrot.slane %v181, %v190
  %v192 = vmul.f32 %v67, %v187
  %v193 = vmul.f32 %v67, %v191
  %v194 = vadd.f32 %v172, %v192
  %v195 = vadd.f32 %v173, %v193
  %v196 = vlaneseq
  %v197 = vshrl.u32 %v196, 7
  %v198 = vsub.s32 3, %v197
  %v199 = vrot.slane %v130, %v198
  %v200 = vlaneseq
  %v201 = vshrl.u32 %v200, 7
  %v202 = vsub.s32 7, %v201
  %v203 = vrot.slane %v130, %v202
  %v206 = vlaneseq
  %v207 = vshrl.u32 %v206, 7
  %v208 = vsub.s32 3, %v207
  %v209 = vrot.slane %v199, %v208
  %v210 = vlaneseq
  %v211 = vshrl.u32 %v210, 7
  %v212 = vsub.s32 3, %v211
  %v213 = vrot.slane %v203, %v212
  %v214 = vmul.f32 %v93, %v209
  %v215 = vmul.f32 %v93, %v213
  %v216 = vadd.f32 %v194, %v214
  %v217 = vadd.f32 %v195, %v215
  %v218 = vsub.f32 0.0, %v216
  %v219 = vsub.f32 0.0, %v217
  %v220 = vmul.f32 %v218, 1.442695
  %v221 = vpow.pop %v220
  %v222 = vmul.f32 %v219, 1.442695
  %v223 = vpow.pop %v222
  %v224 = vadd.f32 %v221, 1.0
  %v225 = vadd.f32 %v223, 1.0
  %v226 = vrcp.pop %v224
  %v227 = vrcp.pop %v225
  %s228 = scalar_lea.vmem %s2, 16
  %229 = vst [vmem:[%s228] sm:$0xff] %v226
  %230 = vst [vmem:[%s228 + $0x8] sm:$0xff] %v227
  // Predicated region
  $region10: #{deta_conv_forward.1} parent=0 // pred_check
    _
  $region11: #{deta_conv_forward.1} parent=0 // pred_check_branch
    %232 = sbr.rel (0) target = $region13
  $region12: #{deta_conv_forward.1} parent=0 // pred_region
    _
  $region13: #{deta_conv_forward.1} parent=0 // pred_fallthru
    _
  // Predicated region
  $region14: #{deta_conv_forward.1} parent=0 // pred_check
    _
  $region15: #{deta_conv_forward.1} parent=0 // pred_check_branch
    %234 = sbr.rel (0) target = $region17
  $region16: #{deta_conv_forward.1} parent=0 // pred_region
    _
  $region17: #{deta_conv_forward.1} parent=0 // pred_fallthru
    _

</llo_original>
